<compile_context>
chip_gen: v5e
topology: v5e:2x2
jax: 0.10.0
libtpu: 0.0.40
codegen_flags: <defaults>
</compile_context>

<pallas_src>
import functools

import jax
import jax.numpy as jnp
from jax import lax
from jax.experimental import pallas as pl
from jax.experimental.pallas import tpu as pltpu


def _cca_ssg_kernel(x1_ref, x2_ref, inv_ref, dec1_ref, dec2_ref,
                    g1_ref, g2_ref, s1_ref, s2_ref, cross_ref,
                    *, n_rows, inv_total):
    step = pl.program_id(0)
    last = pl.num_programs(0) - 1

    @pl.when(step == 0)
    def _init():
        g1_ref[...] = jnp.zeros_like(g1_ref)
        g2_ref[...] = jnp.zeros_like(g2_ref)
        s1_ref[...] = jnp.zeros_like(s1_ref)
        s2_ref[...] = jnp.zeros_like(s2_ref)
        cross_ref[...] = jnp.zeros_like(cross_ref)

    x1 = x1_ref[...].astype(jnp.float32)
    x2 = x2_ref[...].astype(jnp.float32)

    # Column sums and per-column cross dot products (VPU work, hidden under
    # the MXU matmuls below).
    s1_ref[...] += jnp.sum(x1, axis=0, keepdims=True)
    s2_ref[...] += jnp.sum(x2, axis=0, keepdims=True)
    cross_ref[...] += jnp.sum(x1 * x2, axis=0, keepdims=True)

    # Raw Gram matrices on the MXU, contracting over the row axis directly
    # (no materialized transpose).
    dn = (((0,), (0,)), ((), ()))
    g1_ref[...] += lax.dot_general(x1, x1, dn, preferred_element_type=jnp.float32)
    g2_ref[...] += lax.dot_general(x2, x2, dn, preferred_element_type=jnp.float32)

    @pl.when(step == last)
    def _finalize():
        n = jnp.float32(n_rows)
        scale = jnp.float32(inv_total)

        g1 = g1_ref[...]
        g2 = g2_ref[...]
        mu1 = s1_ref[...] / n            # (1, D)
        mu2 = s2_ref[...] / n

        d = g1.shape[0]
        row = lax.broadcasted_iota(jnp.int32, (d, d), 0)
        col = lax.broadcasted_iota(jnp.int32, (d, d), 1)
        iden = (row == col).astype(jnp.float32)

        # Column sum-of-squares == diagonal of the raw Gram matrices.
        sq1 = jnp.sum(g1 * iden, axis=0, keepdims=True)    # (1, D)
        sq2 = jnp.sum(g2 * iden, axis=0, keepdims=True)

        # Unbiased (ddof=1) variance / inverse std, matching torch.std.
        var1 = (sq1 - n * mu1 * mu1) / (n - 1.0)
        var2 = (sq2 - n * mu2 * mu2) / (n - 1.0)
        is1 = lax.rsqrt(var1)
        is2 = lax.rsqrt(var2)

        # loss_inv = -trace(z1^T z2) * scale  -- only column dot products needed.
        cross = cross_ref[...]
        inv_terms = (cross - n * mu1 * mu2) * is1 * is2
        inv_ref[...] = (-scale * jnp.sum(inv_terms)).reshape(1, 1)

        # outer(a, b)[j, k] = a[0, j] * b[0, k]   (tiny K=1 matmul, done once).
        def outer(a, b):
            return lax.dot_general(a, b, dn, preferred_element_type=jnp.float32)

        c1 = (g1 - n * outer(mu1, mu1)) * outer(is1, is1) * scale
        c2 = (g2 - n * outer(mu2, mu2)) * outer(is2, is2) * scale

        dec1_ref[...] = jnp.sum((iden - c1) ** 2).reshape(1, 1)
        dec2_ref[...] = jnp.sum((iden - c2) ** 2).reshape(1, 1)


def _round_up(x, m):
    return ((x + m - 1) // m) * m


def cca_ssg_forward(emb_1, emb_2, warm_n_user, warm_m_item, *, tile_n=512):
    """Returns (loss_inv, loss_dec1, loss_dec2) exactly as the torch module does."""
    assert emb_1.shape == emb_2.shape and emb_1.ndim == 2
    N, D = emb_1.shape
    total = float(warm_n_user + warm_m_item)

    # Row tile: multiple of 8 sublanes, capped at (padded) N and sized so the
    # auto-pipeline's double-buffered input tiles (2 inputs x 2 buffers) plus
    # the O(D^2) accumulators stay far below the scoped VMEM limit on every
    # generation (incl. v7x's 64 MiB physical VMEM).
    vmem_budget = 8 * 1024 * 1024                      # bytes for input tiles
    cap = max(8, vmem_budget // (4 * 4 * max(D, 1)))   # 2 inputs * 2 bufs * 4B
    tile_n = _round_up(max(8, min(tile_n, cap, N)), 8)
    n_pad = _round_up(N, tile_n)
    if n_pad != N:
        pad = ((0, n_pad - N), (0, 0))
        emb_1 = jnp.pad(emb_1, pad)
        emb_2 = jnp.pad(emb_2, pad)
    n_tiles = n_pad // tile_n

    kernel = functools.partial(_cca_ssg_kernel, n_rows=N, inv_total=1.0 / total)

    scalar_spec = pl.BlockSpec((1, 1), lambda i: (0, 0))
    out_shapes = tuple(jax.ShapeDtypeStruct((1, 1), jnp.float32) for _ in range(3))

    outs = pl.pallas_call(
        kernel,
        out_shape=out_shapes,
        grid_spec=pltpu.PrefetchScalarGridSpec(
            num_scalar_prefetch=0,
            grid=(n_tiles,),
            in_specs=[
                pl.BlockSpec((tile_n, D), lambda i: (i, 0)),
                pl.BlockSpec((tile_n, D), lambda i: (i, 0)),
            ],
            out_specs=(scalar_spec, scalar_spec, scalar_spec),
            scratch_shapes=[
                pltpu.VMEM((D, D), jnp.float32),   # G1 = X1^T X1
                pltpu.VMEM((D, D), jnp.float32),   # G2 = X2^T X2
                pltpu.VMEM((1, D), jnp.float32),   # s1
                pltpu.VMEM((1, D), jnp.float32),   # s2
                pltpu.VMEM((1, D), jnp.float32),   # sum(x1 * x2)
            ],
        ),
        compiler_params=pltpu.CompilerParams(
            dimension_semantics=("arbitrary",)),
    )(emb_1, emb_2)

    return tuple(o[0, 0] for o in outs)


def _reference(emb_1, emb_2, warm_n_user, warm_m_item):
    """Plain-JAX reference mirroring the torch forward."""
    def std_unbiased(x):
        m = x.mean(0)
        return jnp.sqrt(jnp.sum((x - m) ** 2, axis=0) / (x.shape[0] - 1))

    z1 = (emb_1 - emb_1.mean(0)) / std_unbiased(emb_1)
    z2 = (emb_2 - emb_2.mean(0)) / std_unbiased(emb_2)
    total = warm_n_user + warm_m_item
    c = (z1.T @ z2) / total
    c1 = (z1.T @ z1) / total
    c2 = (z2.T @ z2) / total
    iden = jnp.eye(c.shape[0], dtype=jnp.float32)
    return (-jnp.trace(c), jnp.sum((iden - c1) ** 2), jnp.sum((iden - c2) ** 2))


if __name__ == "__main__":
    # Small synthetic shapes: N=64 nodes (warm users + warm items), hidden D=32.
    N, D = 64, 32
    warm_n_user, warm_m_item = 40, 24  # warm_n_user + warm_m_item == N

    key = jax.random.PRNGKey(0)
    k1, k2 = jax.random.split(key)
    emb_1 = jax.random.normal(k1, (N, D), dtype=jnp.float32)
    emb_2 = jax.random.normal(k2, (N, D), dtype=jnp.float32)

    ref = _reference(emb_1, emb_2, warm_n_user, warm_m_item)

    # tile_n=16 -> 4 grid steps (exercises streaming accumulation);
    # tile_n=24 -> 3 grid steps with zero-padded tail rows (exercises padding);
    # tile_n=512 -> single step (tile capped to N).
    for tn in (16, 24, 512):
        out = cca_ssg_forward(emb_1, emb_2, warm_n_user, warm_m_item, tile_n=tn)
        jax.block_until_ready(out)
        for got, want in zip(out, ref):
            assert jnp.allclose(got, want, rtol=1e-4, atol=1e-4), (tn, got, want)

    print("KERNEL_OK")
</pallas_src>

<mosaic_0001>
module attributes {stable_mosaic.version = 11 : i64} {
  func.func @_cca_ssg_kernel(%arg0: i32, %arg1: memref<16x32xf32, #tpu.memory_space<vmem>>, %arg2: memref<16x32xf32, #tpu.memory_space<vmem>>, %arg3: memref<1x1xf32, #tpu.memory_space<vmem>>, %arg4: memref<1x1xf32, #tpu.memory_space<vmem>>, %arg5: memref<1x1xf32, #tpu.memory_space<vmem>>, %arg6: memref<32x32xf32, #tpu.memory_space<vmem>>, %arg7: memref<32x32xf32, #tpu.memory_space<vmem>>, %arg8: memref<1x32xf32, #tpu.memory_space<vmem>>, %arg9: memref<1x32xf32, #tpu.memory_space<vmem>>, %arg10: memref<1x32xf32, #tpu.memory_space<vmem>>) attributes {dimension_semantics = [#tpu.dimension_semantics<arbitrary>], iteration_bounds = array<i64: 4>, scalar_prefetch = 0 : i64, scratch_operands = 5 : i64, tpu.core_type = #tpu.core_type<tc>, window_params = [{transform_indices = @transform_0, window_bounds = array<i64: 16, 32>}, {transform_indices = @transform_1, window_bounds = array<i64: 16, 32>}, {pipeline_mode = #tpu.pipeline_mode<synchronous>, transform_indices = @transform_2, window_bounds = array<i64: 1, 1>}, {pipeline_mode = #tpu.pipeline_mode<synchronous>, transform_indices = @transform_3, window_bounds = array<i64: 1, 1>}, {pipeline_mode = #tpu.pipeline_mode<synchronous>, transform_indices = @transform_4, window_bounds = array<i64: 1, 1>}]} {
    %c0_i32 = arith.constant 0 : i32
    %0 = arith.cmpi eq, %arg0, %c0_i32 : i32
    %1 = arith.extui %0 : i1 to i32
    %c0_i32_0 = arith.constant 0 : i32
    %2 = arith.cmpi ne, %1, %c0_i32_0 : i32
    scf.if %2 {
      %cst_29 = arith.constant 0.000000e+00 : f32
      %32 = vector.broadcast %cst_29 : f32 to vector<32x32xf32>
      %c0_30 = arith.constant 0 : index
      %c0_31 = arith.constant 0 : index
      %33 = vector.load %arg6[%c0_30, %c0_31] : memref<32x32xf32, #tpu.memory_space<vmem>>, vector<32x32xf32>
      tpu.vector_store %arg6[%c0_30, %c0_31], %32 {strides = array<i32>} : memref<32x32xf32, #tpu.memory_space<vmem>>, vector<32x32xf32>,
      %cst_32 = arith.constant 0.000000e+00 : f32
      %34 = vector.broadcast %cst_32 : f32 to vector<32x32xf32>
      %c0_33 = arith.constant 0 : index
      %c0_34 = arith.constant 0 : index
      %35 = vector.load %arg7[%c0_33, %c0_34] : memref<32x32xf32, #tpu.memory_space<vmem>>, vector<32x32xf32>
      tpu.vector_store %arg7[%c0_33, %c0_34], %34 {strides = array<i32>} : memref<32x32xf32, #tpu.memory_space<vmem>>, vector<32x32xf32>,
      %cst_35 = arith.constant 0.000000e+00 : f32
      %36 = vector.broadcast %cst_35 : f32 to vector<1x32xf32>
      %c0_36 = arith.constant 0 : index
      %c0_37 = arith.constant 0 : index
      %37 = vector.load %arg8[%c0_36, %c0_37] : memref<1x32xf32, #tpu.memory_space<vmem>>, vector<1x32xf32>
      tpu.vector_store %arg8[%c0_36, %c0_37], %36 {strides = array<i32>} : memref<1x32xf32, #tpu.memory_space<vmem>>, vector<1x32xf32>,
      %cst_38 = arith.constant 0.000000e+00 : f32
      %38 = vector.broadcast %cst_38 : f32 to vector<1x32xf32>
      %c0_39 = arith.constant 0 : index
      %c0_40 = arith.constant 0 : index
      %39 = vector.load %arg9[%c0_39, %c0_40] : memref<1x32xf32, #tpu.memory_space<vmem>>, vector<1x32xf32>
      tpu.vector_store %arg9[%c0_39, %c0_40], %38 {strides = array<i32>} : memref<1x32xf32, #tpu.memory_space<vmem>>, vector<1x32xf32>,
      %cst_41 = arith.constant 0.000000e+00 : f32
      %40 = vector.broadcast %cst_41 : f32 to vector<1x32xf32>
      %c0_42 = arith.constant 0 : index
      %c0_43 = arith.constant 0 : index
      %41 = vector.load %arg10[%c0_42, %c0_43] : memref<1x32xf32, #tpu.memory_space<vmem>>, vector<1x32xf32>
      tpu.vector_store %arg10[%c0_42, %c0_43], %40 {strides = array<i32>} : memref<1x32xf32, #tpu.memory_space<vmem>>, vector<1x32xf32>,
    } else {
    }
    %c0 = arith.constant 0 : index
    %c0_1 = arith.constant 0 : index
    %3 = vector.load %arg1[%c0, %c0_1] : memref<16x32xf32, #tpu.memory_space<vmem>>, vector<16x32xf32>
    %c0_2 = arith.constant 0 : index
    %c0_3 = arith.constant 0 : index
    %4 = vector.load %arg2[%c0_2, %c0_3] : memref<16x32xf32, #tpu.memory_space<vmem>>, vector<16x32xf32>
    %c0_4 = arith.constant 0 : index
    %c0_5 = arith.constant 0 : index
    %5 = vector.load %arg8[%c0_4, %c0_5] : memref<1x32xf32, #tpu.memory_space<vmem>>, vector<1x32xf32>
    %cst = arith.constant dense<0.000000e+00> : vector<32xf32>
    %6 = vector.multi_reduction <add>, %3, %cst [0] : vector<16x32xf32> to vector<32xf32>
    %7 = vector.shape_cast %6 : vector<32xf32> to vector<1x32xf32>
    %8 = arith.addf %5, %7 : vector<1x32xf32>
    %c0_6 = arith.constant 0 : index
    %c0_7 = arith.constant 0 : index
    %9 = vector.load %arg8[%c0_6, %c0_7] : memref<1x32xf32, #tpu.memory_space<vmem>>, vector<1x32xf32>
    tpu.vector_store %arg8[%c0_6, %c0_7], %8 {strides = array<i32>} : memref<1x32xf32, #tpu.memory_space<vmem>>, vector<1x32xf32>,
    %c0_8 = arith.constant 0 : index
    %c0_9 = arith.constant 0 : index
    %10 = vector.load %arg9[%c0_8, %c0_9] : memref<1x32xf32, #tpu.memory_space<vmem>>, vector<1x32xf32>
    %cst_10 = arith.constant dense<0.000000e+00> : vector<32xf32>
    %11 = vector.multi_reduction <add>, %4, %cst_10 [0] : vector<16x32xf32> to vector<32xf32>
    %12 = vector.shape_cast %11 : vector<32xf32> to vector<1x32xf32>
    %13 = arith.addf %10, %12 : vector<1x32xf32>
    %c0_11 = arith.constant 0 : index
    %c0_12 = arith.constant 0 : index
    %14 = vector.load %arg9[%c0_11, %c0_12] : memref<1x32xf32, #tpu.memory_space<vmem>>, vector<1x32xf32>
    tpu.vector_store %arg9[%c0_11, %c0_12], %13 {strides = array<i32>} : memref<1x32xf32, #tpu.memory_space<vmem>>, vector<1x32xf32>,
    %c0_13 = arith.constant 0 : index
    %c0_14 = arith.constant 0 : index
    %15 = vector.load %arg10[%c0_13, %c0_14] : memref<1x32xf32, #tpu.memory_space<vmem>>, vector<1x32xf32>
    %16 = arith.mulf %3, %4 : vector<16x32xf32>
    %cst_15 = arith.constant dense<0.000000e+00> : vector<32xf32>
    %17 = vector.multi_reduction <add>, %16, %cst_15 [0] : vector<16x32xf32> to vector<32xf32>
    %18 = vector.shape_cast %17 : vector<32xf32> to vector<1x32xf32>
    %19 = arith.addf %15, %18 : vector<1x32xf32>
    %c0_16 = arith.constant 0 : index
    %c0_17 = arith.constant 0 : index
    %20 = vector.load %arg10[%c0_16, %c0_17] : memref<1x32xf32, #tpu.memory_space<vmem>>, vector<1x32xf32>
    tpu.vector_store %arg10[%c0_16, %c0_17], %19 {strides = array<i32>} : memref<1x32xf32, #tpu.memory_space<vmem>>, vector<1x32xf32>,
    %c0_18 = arith.constant 0 : index
    %c0_19 = arith.constant 0 : index
    %21 = vector.load %arg6[%c0_18, %c0_19] : memref<32x32xf32, #tpu.memory_space<vmem>>, vector<32x32xf32>
    %cst_20 = arith.constant dense<0.000000e+00> : vector<32x32xf32>
    %22 = tpu.matmul %3, %3, %cst_20 {dimension_numbers = #tpu.dot_dimension_numbers<[0], [0], [1], [1], [0, 1, 1, 1], [], []>} : vector<16x32xf32>, vector<16x32xf32>, vector<32x32xf32> -> vector<32x32xf32>
    %23 = arith.addf %21, %22 : vector<32x32xf32>
    %c0_21 = arith.constant 0 : index
    %c0_22 = arith.constant 0 : index
    %24 = vector.load %arg6[%c0_21, %c0_22] : memref<32x32xf32, #tpu.memory_space<vmem>>, vector<32x32xf32>
    tpu.vector_store %arg6[%c0_21, %c0_22], %23 {strides = array<i32>} : memref<32x32xf32, #tpu.memory_space<vmem>>, vector<32x32xf32>,
    %c0_23 = arith.constant 0 : index
    %c0_24 = arith.constant 0 : index
    %25 = vector.load %arg7[%c0_23, %c0_24] : memref<32x32xf32, #tpu.memory_space<vmem>>, vector<32x32xf32>
    %cst_25 = arith.constant dense<0.000000e+00> : vector<32x32xf32>
    %26 = tpu.matmul %4, %4, %cst_25 {dimension_numbers = #tpu.dot_dimension_numbers<[0], [0], [1], [1], [0, 1, 1, 1], [], []>} : vector<16x32xf32>, vector<16x32xf32>, vector<32x32xf32> -> vector<32x32xf32>
    %27 = arith.addf %25, %26 : vector<32x32xf32>
    %c0_26 = arith.constant 0 : index
    %c0_27 = arith.constant 0 : index
    %28 = vector.load %arg7[%c0_26, %c0_27] : memref<32x32xf32, #tpu.memory_space<vmem>>, vector<32x32xf32>
    tpu.vector_store %arg7[%c0_26, %c0_27], %27 {strides = array<i32>} : memref<32x32xf32, #tpu.memory_space<vmem>>, vector<32x32xf32>,
    %c3_i32 = arith.constant 3 : i32
    %29 = arith.cmpi eq, %arg0, %c3_i32 : i32
    %30 = arith.extui %29 : i1 to i32
    %c0_i32_28 = arith.constant 0 : i32
    %31 = arith.cmpi ne, %30, %c0_i32_28 : i32
    scf.if %31 {
      %c0_29 = arith.constant 0 : index
      %c0_30 = arith.constant 0 : index
      %32 = vector.load %arg6[%c0_29, %c0_30] : memref<32x32xf32, #tpu.memory_space<vmem>>, vector<32x32xf32>
      %c0_31 = arith.constant 0 : index
      %c0_32 = arith.constant 0 : index
      %33 = vector.load %arg7[%c0_31, %c0_32] : memref<32x32xf32, #tpu.memory_space<vmem>>, vector<32x32xf32>
      %c0_33 = arith.constant 0 : index
      %c0_34 = arith.constant 0 : index
      %34 = vector.load %arg8[%c0_33, %c0_34] : memref<1x32xf32, #tpu.memory_space<vmem>>, vector<1x32xf32>
      %cst_35 = arith.constant 6.400000e+01 : f32
      %35 = vector.broadcast %cst_35 : f32 to vector<1x32xf32>
      %36 = arith.divf %34, %35 : vector<1x32xf32>
      %c0_36 = arith.constant 0 : index
      %c0_37 = arith.constant 0 : index
      %37 = vector.load %arg9[%c0_36, %c0_37] : memref<1x32xf32, #tpu.memory_space<vmem>>, vector<1x32xf32>
      %cst_38 = arith.constant 6.400000e+01 : f32
      %38 = vector.broadcast %cst_38 : f32 to vector<1x32xf32>
      %39 = arith.divf %37, %38 : vector<1x32xf32>
      %40 = tpu.iota {dimensions = array<i32: 0>} : vector<32x32xi32>
      %41 = tpu.iota {dimensions = array<i32: 1>} : vector<32x32xi32>
      %42 = arith.cmpi eq, %40, %41 : vector<32x32xi32>
      %43 = arith.extui %42 : vector<32x32xi1> to vector<32x32xi32>
      %44 = arith.sitofp %43 : vector<32x32xi32> to vector<32x32xf32>
      %45 = arith.mulf %32, %44 : vector<32x32xf32>
      %cst_39 = arith.constant dense<0.000000e+00> : vector<32xf32>
      %46 = vector.multi_reduction <add>, %45, %cst_39 [0] : vector<32x32xf32> to vector<32xf32>
      %47 = vector.shape_cast %46 : vector<32xf32> to vector<1x32xf32>
      %48 = arith.mulf %33, %44 : vector<32x32xf32>
      %cst_40 = arith.constant dense<0.000000e+00> : vector<32xf32>
      %49 = vector.multi_reduction <add>, %48, %cst_40 [0] : vector<32x32xf32> to vector<32xf32>
      %50 = vector.shape_cast %49 : vector<32xf32> to vector<1x32xf32>
      %cst_41 = arith.constant 6.400000e+01 : f32
      %51 = vector.broadcast %cst_41 : f32 to vector<1x32xf32>
      %52 = arith.mulf %51, %36 : vector<1x32xf32>
      %53 = arith.mulf %52, %36 : vector<1x32xf32>
      %54 = arith.subf %47, %53 : vector<1x32xf32>
      %cst_42 = arith.constant 6.400000e+01 : f32
      %cst_43 = arith.constant 1.000000e+00 : f32
      %55 = arith.subf %cst_42, %cst_43 : f32
      %56 = vector.broadcast %55 : f32 to vector<1x32xf32>
      %57 = arith.divf %54, %56 : vector<1x32xf32>
      %cst_44 = arith.constant 6.400000e+01 : f32
      %58 = vector.broadcast %cst_44 : f32 to vector<1x32xf32>
      %59 = arith.mulf %58, %39 : vector<1x32xf32>
      %60 = arith.mulf %59, %39 : vector<1x32xf32>
      %61 = arith.subf %50, %60 : vector<1x32xf32>
      %cst_45 = arith.constant 6.400000e+01 : f32
      %cst_46 = arith.constant 1.000000e+00 : f32
      %62 = arith.subf %cst_45, %cst_46 : f32
      %63 = vector.broadcast %62 : f32 to vector<1x32xf32>
      %64 = arith.divf %61, %63 : vector<1x32xf32>
      %65 = math.rsqrt %57 : vector<1x32xf32>
      %66 = math.rsqrt %64 : vector<1x32xf32>
      %c0_47 = arith.constant 0 : index
      %c0_48 = arith.constant 0 : index
      %67 = vector.load %arg10[%c0_47, %c0_48] : memref<1x32xf32, #tpu.memory_space<vmem>>, vector<1x32xf32>
      %cst_49 = arith.constant 6.400000e+01 : f32
      %68 = vector.broadcast %cst_49 : f32 to vector<1x32xf32>
      %69 = arith.mulf %68, %36 : vector<1x32xf32>
      %70 = arith.mulf %69, %39 : vector<1x32xf32>
      %71 = arith.subf %67, %70 : vector<1x32xf32>
      %72 = arith.mulf %71, %65 : vector<1x32xf32>
      %73 = arith.mulf %72, %66 : vector<1x32xf32>
      %cst_50 = arith.constant 0.000000e+00 : f32
      %cst_51 = arith.constant 1.562500e-02 : f32
      %74 = arith.subf %cst_50, %cst_51 : f32
      %75 = vector.shape_cast %73 : vector<1x32xf32> to vector<1x1x32xf32>
      %cst_52 = arith.constant dense<0.000000e+00> : vector<1xf32>
      %76 = vector.multi_reduction <add>, %75, %cst_52 [1, 2] : vector<1x1x32xf32> to vector<1xf32>
      %77 = vector.shape_cast %76 : vector<1xf32> to vector<1x1x1xf32>
      %78 = vector.extract %77[0, 0, 0] : f32 from vector<1x1x1xf32>
      %79 = arith.mulf %74, %78 : f32
      %80 = vector.broadcast %79 : f32 to vector<1x1xf32>
      %c0_53 = arith.constant 0 : index
      %c0_54 = arith.constant 0 : index
      %81 = vector.load %arg3[%c0_53, %c0_54] : memref<1x1xf32, #tpu.memory_space<vmem>>, vector<1x1xf32>
      tpu.vector_store %arg3[%c0_53, %c0_54], %80 {strides = array<i32>} : memref<1x1xf32, #tpu.memory_space<vmem>>, vector<1x1xf32>,
      %cst_55 = arith.constant dense<0.000000e+00> : vector<32x32xf32>
      %82 = tpu.matmul %36, %36, %cst_55 {dimension_numbers = #tpu.dot_dimension_numbers<[0], [0], [1], [1], [0, 1, 1, 1], [], []>} : vector<1x32xf32>, vector<1x32xf32>, vector<32x32xf32> -> vector<32x32xf32>
      %cst_56 = arith.constant 6.400000e+01 : f32
      %83 = vector.broadcast %cst_56 : f32 to vector<32x32xf32>
      %84 = arith.mulf %83, %82 : vector<32x32xf32>
      %85 = arith.subf %32, %84 : vector<32x32xf32>
      %cst_57 = arith.constant dense<0.000000e+00> : vector<32x32xf32>
      %86 = tpu.matmul %65, %65, %cst_57 {dimension_numbers = #tpu.dot_dimension_numbers<[0], [0], [1], [1], [0, 1, 1, 1], [], []>} : vector<1x32xf32>, vector<1x32xf32>, vector<32x32xf32> -> vector<32x32xf32>
      %87 = arith.mulf %85, %86 : vector<32x32xf32>
      %cst_58 = arith.constant 1.562500e-02 : f32
      %88 = vector.broadcast %cst_58 : f32 to vector<32x32xf32>
      %89 = arith.mulf %87, %88 : vector<32x32xf32>
      %cst_59 = arith.constant dense<0.000000e+00> : vector<32x32xf32>
      %90 = tpu.matmul %39, %39, %cst_59 {dimension_numbers = #tpu.dot_dimension_numbers<[0], [0], [1], [1], [0, 1, 1, 1], [], []>} : vector<1x32xf32>, vector<1x32xf32>, vector<32x32xf32> -> vector<32x32xf32>
      %cst_60 = arith.constant 6.400000e+01 : f32
      %91 = vector.broadcast %cst_60 : f32 to vector<32x32xf32>
      %92 = arith.mulf %91, %90 : vector<32x32xf32>
      %93 = arith.subf %33, %92 : vector<32x32xf32>
      %cst_61 = arith.constant dense<0.000000e+00> : vector<32x32xf32>
      %94 = tpu.matmul %66, %66, %cst_61 {dimension_numbers = #tpu.dot_dimension_numbers<[0], [0], [1], [1], [0, 1, 1, 1], [], []>} : vector<1x32xf32>, vector<1x32xf32>, vector<32x32xf32> -> vector<32x32xf32>
      %95 = arith.mulf %93, %94 : vector<32x32xf32>
      %cst_62 = arith.constant 1.562500e-02 : f32
      %96 = vector.broadcast %cst_62 : f32 to vector<32x32xf32>
      %97 = arith.mulf %95, %96 : vector<32x32xf32>
      %98 = arith.subf %44, %89 : vector<32x32xf32>
      %99 = arith.mulf %98, %98 : vector<32x32xf32>
      %100 = vector.shape_cast %99 : vector<32x32xf32> to vector<1x32x32xf32>
      %cst_63 = arith.constant dense<0.000000e+00> : vector<1xf32>
      %101 = vector.multi_reduction <add>, %100, %cst_63 [1, 2] : vector<1x32x32xf32> to vector<1xf32>
      %102 = vector.shape_cast %101 : vector<1xf32> to vector<1x1x1xf32>
      %103 = vector.extract %102[0, 0, 0] : f32 from vector<1x1x1xf32>
      %104 = vector.broadcast %103 : f32 to vector<1x1xf32>
      %c0_64 = arith.constant 0 : index
      %c0_65 = arith.constant 0 : index
      %105 = vector.load %arg4[%c0_64, %c0_65] : memref<1x1xf32, #tpu.memory_space<vmem>>, vector<1x1xf32>
      tpu.vector_store %arg4[%c0_64, %c0_65], %104 {strides = array<i32>} : memref<1x1xf32, #tpu.memory_space<vmem>>, vector<1x1xf32>,
      %106 = arith.subf %44, %97 : vector<32x32xf32>
      %107 = arith.mulf %106, %106 : vector<32x32xf32>
      %108 = vector.shape_cast %107 : vector<32x32xf32> to vector<1x32x32xf32>
      %cst_66 = arith.constant dense<0.000000e+00> : vector<1xf32>
      %109 = vector.multi_reduction <add>, %108, %cst_66 [1, 2] : vector<1x32x32xf32> to vector<1xf32>
      %110 = vector.shape_cast %109 : vector<1xf32> to vector<1x1x1xf32>
      %111 = vector.extract %110[0, 0, 0] : f32 from vector<1x1x1xf32>
      %112 = vector.broadcast %111 : f32 to vector<1x1xf32>
      %c0_67 = arith.constant 0 : index
      %c0_68 = arith.constant 0 : index
      %113 = vector.load %arg5[%c0_67, %c0_68] : memref<1x1xf32, #tpu.memory_space<vmem>>, vector<1x1xf32>
      tpu.vector_store %arg5[%c0_67, %c0_68], %112 {strides = array<i32>} : memref<1x1xf32, #tpu.memory_space<vmem>>, vector<1x1xf32>,
    } else {
    }
    return
  }
  func.func @transform_0(%arg0: i32) -> (i32, i32) {
    %c0_i32 = arith.constant 0 : i32
    %c0_i32_0 = arith.constant 0 : i32
    return %arg0, %c0_i32 : i32, i32
  }
  func.func @transform_1(%arg0: i32) -> (i32, i32) {
    %c0_i32 = arith.constant 0 : i32
    %c0_i32_0 = arith.constant 0 : i32
    return %arg0, %c0_i32 : i32, i32
  }
  func.func @transform_2(%arg0: i32) -> (i32, i32) {
    %c0_i32 = arith.constant 0 : i32
    %c0_i32_0 = arith.constant 0 : i32
    %c0_i32_1 = arith.constant 0 : i32
    return %c0_i32, %c0_i32_0 : i32, i32
  }
  func.func @transform_3(%arg0: i32) -> (i32, i32) {
    %c0_i32 = arith.constant 0 : i32
    %c0_i32_0 = arith.constant 0 : i32
    %c0_i32_1 = arith.constant 0 : i32
    return %c0_i32, %c0_i32_0 : i32, i32
  }
  func.func @transform_4(%arg0: i32) -> (i32, i32) {
    %c0_i32 = arith.constant 0 : i32
    %c0_i32_0 = arith.constant 0 : i32
    %c0_i32_1 = arith.constant 0 : i32
    return %c0_i32, %c0_i32_0 : i32, i32
  }
}

</mosaic_0001>

<llo_original>
// kernel: tpu_custom_call.1
$region0: #{tpu_custom_call.1}
  #allocation0 [shape = 'u32[]', space=smem, size = 0x4, offset = 0x4, fixed_abs, tag = 'smem constant byte address 0x4 - core index']
  #allocation1 [shape = 'u32[72,128]{1,0:T(1,128)}', space=vmem, size = 0x9000, scoped, tag = 'internal scratch']
  #allocation2 [shape = 'f32[32,32]{1,0:T(8,128)}', space=vmem, size = 0x4000, scoped, tag = 'scratch operand']
  #allocation3 [shape = 'f32[32,32]{1,0:T(8,128)}', space=vmem, size = 0x4000, scoped, tag = 'scratch operand']
  #allocation4 [shape = 'f32[1,32]{1,0:T(1,128)}', space=vmem, size = 0x200, scoped, tag = 'scratch operand']
  #allocation5 [shape = 'f32[1,32]{1,0:T(1,128)}', space=vmem, size = 0x200, scoped, tag = 'scratch operand']
  #allocation6 [shape = 'f32[1,32]{1,0:T(1,128)}', space=vmem, size = 0x200, scoped, tag = 'scratch operand']
  %s0 = inlined_call_operand.vmem [shape: f32[64,32], index: 0, kind: input, shape index: {}]
  %s1 = inlined_call_operand.vmem [shape: f32[64,32], index: 1, kind: input, shape index: {}]
  %s2 = inlined_call_operand.hbm [shape: f32[1,1], index: 2, kind: output, shape index: {0}]
  %s3 = inlined_call_operand.hbm [shape: f32[1,1], index: 3, kind: output, shape index: {1}]
  %s4 = inlined_call_operand.hbm [shape: f32[1,1], index: 4, kind: output, shape index: {2}]
  %5 = xla_tuple %s2, %s3, %s4
  %s6 = sld [smem:[#allocation0]]
  $region65: #{tpu_custom_call.1} parent=0
    _
  %s8 = ssub.s32 1, %s6
  %s9 = scalar_select 0, %s8, %s6
  $region1: #{tpu_custom_call.1} parent=0
    #allocation7 [shape = 'u8[512]{0}', space=vmem, size = 0x400, scoped, tag = 'output window, operand 0, single buffered']
    #allocation8 [shape = 's32[2]{0}', space=sflag, size = 0x8, scoped, tag = 'scoped memory for tpu_custom_call.1']
    #allocation9 [shape = 'u8[512]{0}', space=vmem, size = 0x400, scoped, tag = 'output window, operand 1, single buffered']
    #allocation10 [shape = 's32[1]{0}', space=sflag, size = 0x4, scoped, tag = 'scoped memory for tpu_custom_call.1']
    #allocation11 [shape = 'u8[512]{0}', space=vmem, size = 0x400, scoped, tag = 'output window, operand 2, single buffered']
    %10 = vsyncpa [#allocation8], 0
    %11 = vsyncpa [#allocation10], 0
    loop: start=0, step=1, limit=6
    $region2: #{tpu_custom_call.1} parent=1 // loop_pre_header
      _
    $region3: #{tpu_custom_call.1} parent=1 // loop_header
      %s13 = sphi 0, %s17
      %p14 = scmp.ge.s32.totalorder %s13, 6
      %s23 = sphi 0, %s25
      %s26 = sphi 0, %s23
      %s27 = sphi 0, %s26
      %s43 = sphi 0, %s27
      %s49 = sphi 0, %s51
      %s52 = sphi 0, %s49
      %s53 = sphi 0, %s52
      %s69 = sphi 0, %s53
      %s73 = sphi 0, %s73
      %s75 = sphi 0, %s73
      %s76 = sphi 0, %s75
      %s90 = sphi 0, %s76
      %s94 = sphi 0, %s94
      %s96 = sphi 0, %s94
      %s97 = sphi 0, %s96
      %s111 = sphi 0, %s97
      %s115 = sphi 0, %s115
      %s117 = sphi 0, %s115
      %s118 = sphi 0, %s117
      %s132 = sphi 0, %s118
    $region4: #{tpu_custom_call.1} parent=1 // loop_header_branch
      %16 = sbr.rel (%p14) target = $region8
    $region5: #{tpu_custom_call.1} parent=1 // loop_body
      %s18 = ssub.s32 %s13, 1
      %s19 = ssub.s32 %s13, 2
      %s20 = sadd.s32 %s13, 1
      %s21 = ssub.s32 %s13, %s20
      %p22 = scmp.eq.s32.totalorder %s21, 0
      %s24 = sadd.s32 %s23, 1
      %s25 = scalar_select %p22, %s23, %s24
      %p28 = pneg %p22
      %p29 = scmp.eq.s32.totalorder %s13, 3
      %p30 = por %p28, %p29
      %p31 = scmp.ne.s32.totalorder %s23, %s26
      %p32 = scmp.eq.s32.totalorder %s13, 0
      %p33 = por %p31, %p32
      %p34 = scmp.ne.s32.totalorder %s23, %s26
      %p35 = scmp.eq.s32.totalorder %s18, 3
      %p36 = por %p34, %p35
      %p37 = scmp.ne.s32.totalorder %s26, %s27
      %p38 = scmp.eq.s32.totalorder %s18, 0
      %p39 = por %p37, %p38
      %p40 = scmp.ne.s32.totalorder %s26, %s27
      %p41 = scmp.eq.s32.totalorder %s19, 3
      %p42 = por %p40, %p41
      %p44 = scmp.ne.s32.totalorder %s27, %s43
      %p45 = scmp.eq.s32.totalorder %s19, 0
      %p46 = por %p44, %p45
      %s47 = ssub.s32 %s13, %s20
      %p48 = scmp.eq.s32.totalorder %s47, 0
      %s50 = sadd.s32 %s49, 1
      %s51 = scalar_select %p48, %s49, %s50
      %p54 = pneg %p48
      %p55 = scmp.eq.s32.totalorder %s13, 3
      %p56 = por %p54, %p55
      %p57 = scmp.ne.s32.totalorder %s49, %s52
      %p58 = scmp.eq.s32.totalorder %s13, 0
      %p59 = por %p57, %p58
      %p60 = scmp.ne.s32.totalorder %s49, %s52
      %p61 = scmp.eq.s32.totalorder %s18, 3
      %p62 = por %p60, %p61
      %p63 = scmp.ne.s32.totalorder %s52, %s53
      %p64 = scmp.eq.s32.totalorder %s18, 0
      %p65 = por %p63, %p64
      %p66 = scmp.ne.s32.totalorder %s52, %s53
      %p67 = scmp.eq.s32.totalorder %s19, 3
      %p68 = por %p66, %p67
      %p70 = scmp.ne.s32.totalorder %s53, %s69
      %p71 = scmp.eq.s32.totalorder %s19, 0
      %p72 = por %p70, %p71
      %s74 = sadd.s32 %s73, 1
      %p77 = scmp.eq.s32.totalorder %s13, 3
      %p78 = scmp.ne.s32.totalorder %s73, %s75
      %p79 = scmp.eq.s32.totalorder %s13, 0
      %p80 = por %p78, %p79
      %p81 = scmp.ne.s32.totalorder %s73, %s75
      %p82 = scmp.eq.s32.totalorder %s18, 3
      %p83 = por %p81, %p82
      %p84 = scmp.ne.s32.totalorder %s75, %s76
      %p85 = scmp.eq.s32.totalorder %s18, 0
      %p86 = por %p84, %p85
      %p87 = scmp.ne.s32.totalorder %s75, %s76
      %p88 = scmp.eq.s32.totalorder %s19, 3
      %p89 = por %p87, %p88
      %p91 = scmp.ne.s32.totalorder %s76, %s90
      %p92 = scmp.eq.s32.totalorder %s19, 0
      %p93 = por %p91, %p92
      %s95 = sadd.s32 %s94, 1
      %p98 = scmp.eq.s32.totalorder %s13, 3
      %p99 = scmp.ne.s32.totalorder %s94, %s96
      %p100 = scmp.eq.s32.totalorder %s13, 0
      %p101 = por %p99, %p100
      %p102 = scmp.ne.s32.totalorder %s94, %s96
      %p103 = scmp.eq.s32.totalorder %s18, 3
      %p104 = por %p102, %p103
      %p105 = scmp.ne.s32.totalorder %s96, %s97
      %p106 = scmp.eq.s32.totalorder %s18, 0
      %p107 = por %p105, %p106
      %p108 = scmp.ne.s32.totalorder %s96, %s97
      %p109 = scmp.eq.s32.totalorder %s19, 3
      %p110 = por %p108, %p109
      %p112 = scmp.ne.s32.totalorder %s97, %s111
      %p113 = scmp.eq.s32.totalorder %s19, 0
      %p114 = por %p112, %p113
      %s116 = sadd.s32 %s115, 1
      %p119 = scmp.eq.s32.totalorder %s13, 3
      %p120 = scmp.ne.s32.totalorder %s115, %s117
      %p121 = scmp.eq.s32.totalorder %s13, 0
      %p122 = por %p120, %p121
      %p123 = scmp.ne.s32.totalorder %s115, %s117
      %p124 = scmp.eq.s32.totalorder %s18, 3
      %p125 = por %p123, %p124
      %p126 = scmp.ne.s32.totalorder %s117, %s118
      %p127 = scmp.eq.s32.totalorder %s18, 0
      %p128 = por %p126, %p127
      %p129 = scmp.ne.s32.totalorder %s117, %s118
      %p130 = scmp.eq.s32.totalorder %s19, 3
      %p131 = por %p129, %p130
      %p133 = scmp.ne.s32.totalorder %s118, %s132
      %p134 = scmp.eq.s32.totalorder %s19, 0
      %p135 = por %p133, %p134
      %p136 = scmp.le.s32.totalorder 1, %s13
      %p137 = scmp.lt.s32.totalorder %s13, 5
      %p138 = pnand %p136, %p137
      %p139 = pneg %p138
      // Predicated region
      $region9: #{tpu_custom_call.1} parent=5 // pred_check
        _
      $region10: #{tpu_custom_call.1} parent=5 // pred_check_branch
        %141 = sbr.rel (%p138) target = $region12
      $region11: #{tpu_custom_call.1} parent=5 // pred_region
        %s142 = ssub.s32 %s13, 1
      $region12: #{tpu_custom_call.1} parent=5 // pred_fallthru
        _
      %p143 = scmp.lt.s32.totalorder %s13, 4
      // Predicated region
      $region13: #{tpu_custom_call.1} parent=5 // pred_check
        %p144 = pneg %p143
      $region14: #{tpu_custom_call.1} parent=5 // pred_check_branch
        %146 = sbr.rel (%p144) target = $region16
      $region15: #{tpu_custom_call.1} parent=5 // pred_region
        // Predicated region
        $region17: #{tpu_custom_call.1} parent=15 // pred_check
          %p147 = pneg %p33
        $region18: #{tpu_custom_call.1} parent=15 // pred_check_branch
          %149 = sbr.rel (%p147) target = $region20
        $region19: #{tpu_custom_call.1} parent=15 // pred_region
          %s150 = smul.u32 2, %s13
          %p151 = scmp.lt.s32.totalorder %s150, 7
          %s152 = scalar_select %p151, %s150, 7
          %s153 = smul.addr %s152, 8
          %s154 = scalar_lea.vmem %s0, %s153
          %s155 = smul.u32 2, %s13
        $region20: #{tpu_custom_call.1} parent=15 // pred_fallthru
          _
        // Predicated region
        $region21: #{tpu_custom_call.1} parent=15 // pred_check
          %p156 = pneg %p59
        $region22: #{tpu_custom_call.1} parent=15 // pred_check_branch
          %158 = sbr.rel (%p156) target = $region24
        $region23: #{tpu_custom_call.1} parent=15 // pred_region
          %s159 = smul.u32 2, %s13
          %p160 = scmp.lt.s32.totalorder %s159, 7
          %s161 = scalar_select %p160, %s159, 7
          %s162 = smul.addr %s161, 8
          %s163 = scalar_lea.vmem %s1, %s162
          %s164 = smul.u32 2, %s13
        $region24: #{tpu_custom_call.1} parent=15 // pred_fallthru
          _
      $region16: #{tpu_custom_call.1} parent=5 // pred_fallthru
        _
      %p165 = scmp.le.s32.totalorder 1, %s13
      %p166 = scmp.lt.s32.totalorder %s13, 5
      %p167 = pnand %p165, %p166
      %p168 = pneg %p167
      // Predicated region
      $region25: #{tpu_custom_call.1} parent=5 // pred_check
        _
      $region26: #{tpu_custom_call.1} parent=5 // pred_check_branch
        %170 = sbr.rel (%p167) target = $region28
      $region27: #{tpu_custom_call.1} parent=5 // pred_region
        %s171 = ssub.s32 %s13, 1
        %s172 = smul.u32 2, %s18
        %p173 = scmp.lt.s32.totalorder %s172, 7
        %s174 = scalar_select %p173, %s172, 7
        %s175 = smul.addr %s174, 8
        %s176 = scalar_lea.vmem %s0, %s175
        %p177 = pneg %p39
        %p178 = pneg %p36
        %s179 = smul.u32 2, %s18
        %p180 = scmp.lt.s32.totalorder %s179, 7
        %s181 = scalar_select %p180, %s179, 7
        %s182 = smul.addr %s181, 8
        %s183 = scalar_lea.vmem %s1, %s182
        %p184 = pneg %p65
        %p185 = pneg %p62
        %p186 = pneg %p86
        %p187 = pneg %p83
        %p188 = pneg %p107
        %p189 = pneg %p104
        %p190 = pneg %p128
        %p191 = pneg %p125
        %s192 = smul.u32 2, %s18
        %p193 = scmp.lt.s32.totalorder %s192, 7
        %s194 = scalar_select %p193, %s192, 7
        %s195 = smul.addr %s194, 8
        %s196 = scalar_lea.vmem %s0, %s195
        %s197 = smul.u32 2, %s18
        %s198 = smul.u32 2, %s18
        %p199 = scmp.lt.s32.totalorder %s198, 7
        %s200 = scalar_select %p199, %s198, 7
        %s201 = smul.addr %s200, 8
        %s202 = scalar_lea.vmem %s1, %s201
        %s203 = smul.u32 2, %s18
        %p204 = scmp.eq.s32.totalorder %s18, 0
        // Predicated region
        $region29: #{tpu_custom_call.1} parent=27 // pred_check
          %p205 = pneg %p204
        $region30: #{tpu_custom_call.1} parent=27 // pred_check_branch
          %207 = sbr.rel (%p205) target = $region32
        $region31: #{tpu_custom_call.1} parent=27 // pred_region
          %vm208 = vcmask 261120
          %209 = vst.msk [vmem:[#allocation2] sm:$0xff] %vm208, 0.0
          %210 = vst.msk [vmem:[#allocation2 + $0x8] sm:$0xff] %vm208, 0.0
          %211 = vst.msk [vmem:[#allocation2 + $0x10] sm:$0xff] %vm208, 0.0
          %212 = vst.msk [vmem:[#allocation2 + $0x18] sm:$0xff] %vm208, 0.0
          %213 = vst.msk [vmem:[#allocation3] sm:$0xff] %vm208, 0.0
          %214 = vst.msk [vmem:[#allocation3 + $0x8] sm:$0xff] %vm208, 0.0
          %215 = vst.msk [vmem:[#allocation3 + $0x10] sm:$0xff] %vm208, 0.0
          %216 = vst.msk [vmem:[#allocation3 + $0x18] sm:$0xff] %vm208, 0.0
          %vm217 = vcmask 253952
          %218 = vst.msk [vmem:[#allocation4] sm:$0x1] %vm217, 0.0
          %219 = vst.msk [vmem:[#allocation5] sm:$0x1] %vm217, 0.0
          %220 = vst.msk [vmem:[#allocation6] sm:$0x1] %vm217, 0.0
        $region32: #{tpu_custom_call.1} parent=27 // pred_fallthru
          _
        %v221 = vld [vmem:[%s196] sm:$0xff]
        %v222 = vld [vmem:[%s196 + $0x8] sm:$0xff]
        %v223 = vld [vmem:[%s202] sm:$0xff]
        %v224 = vld [vmem:[%s202 + $0x8] sm:$0xff]
        %v225 = vld [vmem:[#allocation4] sm:$0x1]
        %vm226 = vcmask 261120
        %v227 = vsel %vm226, %v221, 0.0
        %v228 = vsel %vm226, %v222, 0.0
        %v229 = vadd.f32 %v227, %v228
        %v230 = vrot.slane %v229, 4
        %v231 = vadd.f32 %v229, %v230
        %v232 = vrot.slane %v231, 2
        %v233 = vadd.f32 %v231, %v232
        %v234 = vrot.slane %v233, 1
        %v235 = vadd.f32 %v233, %v234
        %v236 = vadd.f32 %v225, %v235
        %vm237 = vcmask 253952
        %238 = vst.msk [vmem:[#allocation4] sm:$0x1] %vm237, %v236
        %v239 = vld [vmem:[#allocation5] sm:$0x1]
        %v240 = vsel %vm226, %v223, 0.0
        %v241 = vsel %vm226, %v224, 0.0
        %v242 = vadd.f32 %v240, %v241
        %v243 = vrot.slane %v242, 4
        %v244 = vadd.f32 %v242, %v243
        %v245 = vrot.slane %v244, 2
        %v246 = vadd.f32 %v244, %v245
        %v247 = vrot.slane %v246, 1
        %v248 = vadd.f32 %v246, %v247
        %v249 = vadd.f32 %v239, %v248
        %250 = vst.msk [vmem:[#allocation5] sm:$0x1] %vm237, %v249
        %v251 = vld [vmem:[#allocation6] sm:$0x1]
        %v252 = vmul.f32 %v221, %v223
        %v253 = vmul.f32 %v222, %v224
        %v254 = vsel %vm226, %v252, 0.0
        %v255 = vsel %vm226, %v253, 0.0
        %v256 = vadd.f32 %v254, %v255
        %v257 = vrot.slane %v256, 4
        %v258 = vadd.f32 %v256, %v257
        %v259 = vrot.slane %v258, 2
        %v260 = vadd.f32 %v258, %v259
        %v261 = vrot.slane %v260, 1
        %v262 = vadd.f32 %v260, %v261
        %v263 = vadd.f32 %v251, %v262
        %264 = vst.msk [vmem:[#allocation6] sm:$0x1] %vm237, %v263
        %v265 = vld [vmem:[#allocation2] sm:$0xff]
        %v266 = vld [vmem:[#allocation2 + $0x8] sm:$0xff]
        %v267 = vld [vmem:[#allocation2 + $0x10] sm:$0xff]
        %v268 = vld [vmem:[#allocation2 + $0x18] sm:$0xff]
        %269 = vxpose.xlu0.b32.start [1/16] %v221, 128
        %270 = vxpose.xlu0.b32.cont [2/16] %v222, 128
        %271 = vxpose.xlu0.b32.cont [3/16] 0.0, 128
        %272 = vxpose.xlu0.b32.cont [4/16] 0.0, 128
        %273 = vxpose.xlu0.b32.cont [5/16] 0.0, 128
        %274 = vxpose.xlu0.b32.cont [6/16] 0.0, 128
        %275 = vxpose.xlu0.b32.cont [7/16] 0.0, 128
        %276 = vxpose.xlu0.b32.cont [8/16] 0.0, 128
        %277 = vxpose.xlu0.b32.cont [9/16] 0.0, 128
        %278 = vxpose.xlu0.b32.cont [10/16] 0.0, 128
        %279 = vxpose.xlu0.b32.cont [11/16] 0.0, 128
        %280 = vxpose.xlu0.b32.cont [12/16] 0.0, 128
        %281 = vxpose.xlu0.b32.cont [13/16] 0.0, 128
        %282 = vxpose.xlu0.b32.cont [14/16] 0.0, 128
        %283 = vxpose.xlu0.b32.cont [15/16] 0.0, 128
        %284 = vxpose.xlu0.b32.end [16/16] 0.0, 128
        %v285 = vpop.trf.xlu0
        %v286 = vpop.trf.xlu0
        %v287 = vpop.trf.xlu0
        %v288 = vpop.trf.xlu0
        %v289 = vpop.trf.xlu0
        %v290 = vpop.trf.xlu0
        %v291 = vpop.trf.xlu0
        %v292 = vpop.trf.xlu0
        %v293 = vpop.trf.xlu0
        %v294 = vpop.trf.xlu0
        %v295 = vpop.trf.xlu0
        %v296 = vpop.trf.xlu0
        %v297 = vpop.trf.xlu0
        %v298 = vpop.trf.xlu0
        %v299 = vpop.trf.xlu0
        %v300 = vpop.trf.xlu0
        %vm301 = vcmask 130048
        %v303 = vsel %vm301, %v285, 0
        %v306 = vsel %vm301, %v286, 0
        %v309 = vsel %vm301, %v287, 0
        %v312 = vsel %vm301, %v288, 0
        %314 = vmatpush.msra.mxu0 0.0
        %315 = vmatpush.msra.mxu0 0.0
        %316 = vmatpush.msra.mxu0 0.0
        %317 = vmatpush.msra.mxu0 0.0
        %318 = vmatpush.msra.mxu0 0.0
        %319 = vmatpush.msra.mxu0 0.0
        %320 = vmatpush.msra.mxu0 0.0
        %321 = vmatpush.msra.mxu0 0.0
        %322 = vmatpush.msra.mxu0 0.0
        %323 = vmatpush.msra.mxu0 0.0
        %324 = vmatpush.msra.mxu0 0.0
        %325 = vmatpush.msra.mxu0 0.0
        %326 = vmatpush.msra.mxu0 0.0
        %327 = vmatpush.msra.mxu0 0.0
        %328 = vmatpush.msra.mxu0 %v222
        %329 = vmatpush.msra.mxu0 %v221
        %330 = vmatmul.f32.gmra.mxu0 %v303
        %v331 = vpop.f32.mrf.mxu0
        %v332 = vadd.f32 0.0, %v331
        %333 = vmatmul.f32.gmra.mxu0 %v306
        %v334 = vpop.f32.mrf.mxu0
        %v335 = vadd.f32 0.0, %v334
        %336 = vmatmul.f32.gmra.mxu0 %v309
        %v337 = vpop.f32.mrf.mxu0
        %v338 = vadd.f32 0.0, %v337
        %339 = vmatmul.f32.gmra.mxu0 %v312
        %v340 = vpop.f32.mrf.mxu0
        %v341 = vadd.f32 0.0, %v340
        %342 = vdwg.mxu0
        %v343 = vadd.f32 %v265, %v332
        %v344 = vadd.f32 %v266, %v335
        %v345 = vadd.f32 %v267, %v338
        %v346 = vadd.f32 %v268, %v341
        %347 = vst.msk [vmem:[#allocation2] sm:$0xff] %vm226, %v343
        %348 = vst.msk [vmem:[#allocation2 + $0x8] sm:$0xff] %vm226, %v344
        %349 = vst.msk [vmem:[#allocation2 + $0x10] sm:$0xff] %vm226, %v345
        %350 = vst.msk [vmem:[#allocation2 + $0x18] sm:$0xff] %vm226, %v346
        %v351 = vld [vmem:[#allocation3] sm:$0xff]
        %v352 = vld [vmem:[#allocation3 + $0x8] sm:$0xff]
        %v353 = vld [vmem:[#allocation3 + $0x10] sm:$0xff]
        %v354 = vld [vmem:[#allocation3 + $0x18] sm:$0xff]
        %355 = vxpose.xlu0.b32.start [1/16] %v223, 128
        %356 = vxpose.xlu0.b32.cont [2/16] %v224, 128
        %357 = vxpose.xlu0.b32.cont [3/16] 0.0, 128
        %358 = vxpose.xlu0.b32.cont [4/16] 0.0, 128
        %359 = vxpose.xlu0.b32.cont [5/16] 0.0, 128
        %360 = vxpose.xlu0.b32.cont [6/16] 0.0, 128
        %361 = vxpose.xlu0.b32.cont [7/16] 0.0, 128
        %362 = vxpose.xlu0.b32.cont [8/16] 0.0, 128
        %363 = vxpose.xlu0.b32.cont [9/16] 0.0, 128
        %364 = vxpose.xlu0.b32.cont [10/16] 0.0, 128
        %365 = vxpose.xlu0.b32.cont [11/16] 0.0, 128
        %366 = vxpose.xlu0.b32.cont [12/16] 0.0, 128
        %367 = vxpose.xlu0.b32.cont [13/16] 0.0, 128
        %368 = vxpose.xlu0.b32.cont [14/16] 0.0, 128
        %369 = vxpose.xlu0.b32.cont [15/16] 0.0, 128
        %370 = vxpose.xlu0.b32.end [16/16] 0.0, 128
        %v371 = vpop.trf.xlu0
        %v372 = vpop.trf.xlu0
        %v373 = vpop.trf.xlu0
        %v374 = vpop.trf.xlu0
        %v375 = vpop.trf.xlu0
        %v376 = vpop.trf.xlu0
        %v377 = vpop.trf.xlu0
        %v378 = vpop.trf.xlu0
        %v379 = vpop.trf.xlu0
        %v380 = vpop.trf.xlu0
        %v381 = vpop.trf.xlu0
        %v382 = vpop.trf.xlu0
        %v383 = vpop.trf.xlu0
        %v384 = vpop.trf.xlu0
        %v385 = vpop.trf.xlu0
        %v386 = vpop.trf.xlu0
        %v388 = vsel %vm301, %v371, 0
        %v391 = vsel %vm301, %v372, 0
        %v394 = vsel %vm301, %v373, 0
        %v397 = vsel %vm301, %v374, 0
        %399 = vmatpush.msra.mxu0 0.0
        %400 = vmatpush.msra.mxu0 0.0
        %401 = vmatpush.msra.mxu0 0.0
        %402 = vmatpush.msra.mxu0 0.0
        %403 = vmatpush.msra.mxu0 0.0
        %404 = vmatpush.msra.mxu0 0.0
        %405 = vmatpush.msra.mxu0 0.0
        %406 = vmatpush.msra.mxu0 0.0
        %407 = vmatpush.msra.mxu0 0.0
        %408 = vmatpush.msra.mxu0 0.0
        %409 = vmatpush.msra.mxu0 0.0
        %410 = vmatpush.msra.mxu0 0.0
        %411 = vmatpush.msra.mxu0 0.0
        %412 = vmatpush.msra.mxu0 0.0
        %413 = vmatpush.msra.mxu0 %v224
        %414 = vmatpush.msra.mxu0 %v223
        %415 = vmatmul.f32.gmra.mxu0 %v388
        %v416 = vpop.f32.mrf.mxu0
        %v417 = vadd.f32 0.0, %v416
        %418 = vmatmul.f32.gmra.mxu0 %v391
        %v419 = vpop.f32.mrf.mxu0
        %v420 = vadd.f32 0.0, %v419
        %421 = vmatmul.f32.gmra.mxu0 %v394
        %v422 = vpop.f32.mrf.mxu0
        %v423 = vadd.f32 0.0, %v422
        %424 = vmatmul.f32.gmra.mxu0 %v397
        %v425 = vpop.f32.mrf.mxu0
        %v426 = vadd.f32 0.0, %v425
        %427 = vdwg.mxu0
        %v428 = vadd.f32 %v351, %v417
        %v429 = vadd.f32 %v352, %v420
        %v430 = vadd.f32 %v353, %v423
        %v431 = vadd.f32 %v354, %v426
        %432 = vst.msk [vmem:[#allocation3] sm:$0xff] %vm226, %v428
        %433 = vst.msk [vmem:[#allocation3 + $0x8] sm:$0xff] %vm226, %v429
        %434 = vst.msk [vmem:[#allocation3 + $0x10] sm:$0xff] %vm226, %v430
        %435 = vst.msk [vmem:[#allocation3 + $0x18] sm:$0xff] %vm226, %v431
        %p436 = scmp.eq.s32.totalorder %s18, 3
        // Predicated region
        $region33: #{tpu_custom_call.1} parent=27 // pred_check
          %p437 = pneg %p436
        $region34: #{tpu_custom_call.1} parent=27 // pred_check_branch
          %439 = sbr.rel (%p437) target = $region36
        $region35: #{tpu_custom_call.1} parent=27 // pred_region
          %v440 = vld [vmem:[#allocation2] sm:$0xff]
          %v441 = vld [vmem:[#allocation2 + $0x8] sm:$0xff]
          %v442 = vld [vmem:[#allocation2 + $0x10] sm:$0xff]
          %v443 = vld [vmem:[#allocation2 + $0x18] sm:$0xff]
          %v444 = vld [vmem:[#allocation3] sm:$0xff]
          %v445 = vld [vmem:[#allocation3 + $0x8] sm:$0xff]
          %v446 = vld [vmem:[#allocation3 + $0x10] sm:$0xff]
          %v447 = vld [vmem:[#allocation3 + $0x18] sm:$0xff]
          %v448 = vld [vmem:[#allocation4] sm:$0x1]
          %v449 = vrcp.pop 64.0
          %v450 = vmul.f32 64.0, %v449
          %v451 = vsub.f32 1.0, %v450
          %v452 = vmul.f32 %v449, %v451
          %v453 = vadd.f32 %v449, %v452
          %vm454 = vweird.f32 %v449
          %v455 = vsel %vm454, %v449, %v453
          %v456 = vmul.f32 %v448, %v455
          %v457 = vld [vmem:[#allocation5] sm:$0x1]
          %v458 = vmul.f32 %v457, %v455
          %v459 = vlaneseq
          %v460 = vshrl.u32 %v459, 7
          %v461 = vadd.s32 %v460, 8
          %v462 = vadd.s32 %v460, 16
          %v463 = vadd.s32 %v460, 24
          %v464 = vlaneseq
          %v465 = vand.u32 %v464, 127
          %vm466 = vcmp.eq.s32.totalorder %v460, %v465
          %vm467 = vcmp.eq.s32.totalorder %v461, %v465
          %vm468 = vcmp.eq.s32.totalorder %v462, %v465
          %vm469 = vcmp.eq.s32.totalorder %v463, %v465
          %v470 = vsel %vm466, 1, 0
          %v471 = vsel %vm467, 1, 0
          %v472 = vsel %vm468, 1, 0
          %v473 = vsel %vm469, 1, 0
          %v474 = vcvt.s32.f32 %v470
          %v475 = vcvt.s32.f32 %v471
          %v476 = vcvt.s32.f32 %v472
          %v477 = vcvt.s32.f32 %v473
          %v478 = vmul.f32 %v440, %v474
          %v479 = vmul.f32 %v441, %v475
          %v480 = vmul.f32 %v442, %v476
          %v481 = vmul.f32 %v443, %v477
          %v482 = vsel %vm226, %v478, 0.0
          %v483 = vsel %vm226, %v479, 0.0
          %v484 = vadd.f32 %v482, %v483
          %v485 = vsel %vm226, %v480, 0.0
          %v486 = vadd.f32 %v484, %v485
          %v487 = vsel %vm226, %v481, 0.0
          %v488 = vadd.f32 %v486, %v487
          %v489 = vrot.slane %v488, 4
          %v490 = vadd.f32 %v488, %v489
          %v491 = vrot.slane %v490, 2
          %v492 = vadd.f32 %v490, %v491
          %v493 = vrot.slane %v492, 1
          %v494 = vadd.f32 %v492, %v493
          %v495 = vmul.f32 %v444, %v474
          %v496 = vmul.f32 %v445, %v475
          %v497 = vmul.f32 %v446, %v476
          %v498 = vmul.f32 %v447, %v477
          %v499 = vsel %vm226, %v495, 0.0
          %v500 = vsel %vm226, %v496, 0.0
          %v501 = vadd.f32 %v499, %v500
          %v502 = vsel %vm226, %v497, 0.0
          %v503 = vadd.f32 %v501, %v502
          %v504 = vsel %vm226, %v498, 0.0
          %v505 = vadd.f32 %v503, %v504
          %v506 = vrot.slane %v505, 4
          %v507 = vadd.f32 %v505, %v506
          %v508 = vrot.slane %v507, 2
          %v509 = vadd.f32 %v507, %v508
          %v510 = vrot.slane %v509, 1
          %v511 = vadd.f32 %v509, %v510
          %v512 = vmul.f32 %v456, 64.0
          %v513 = vmul.f32 %v512, %v456
          %v514 = vsub.f32 %v494, %v513
          %v515 = vrcp.pop 63.0
          %v516 = vmul.f32 63.0, %v515
          %v517 = vsub.f32 1.0, %v516
          %v518 = vmul.f32 %v515, %v517
          %v519 = vadd.f32 %v515, %v518
          %vm520 = vweird.f32 %v515
          %v521 = vsel %vm520, %v515, %v519
          %v522 = vmul.f32 %v514, %v521
          %v523 = vmul.f32 %v458, 64.0
          %v524 = vmul.f32 %v523, %v458
          %v525 = vsub.f32 %v511, %v524
          %v526 = vmul.f32 %v525, %v521
          %v527 = vrsqrt.pop %v522
          %v528 = vmul.f32 %v527, %v522
          %v529 = vmul.f32 %v528, %v527
          %v530 = vmul.f32 0.5, %v529
          %v531 = vsub.f32 1.5, %v530
          %v532 = vmul.f32 %v527, %v531
          %vm533 = vweird.f32 %v522
          %vm534 = vweird.f32 %v527
          %vm535 = vmor %vm533, %vm534
          %v536 = vsel %vm535, %v527, %v532
          %v537 = vrsqrt.pop %v526
          %v538 = vmul.f32 %v537, %v526
          %v539 = vmul.f32 %v538, %v537
          %v540 = vmul.f32 0.5, %v539
          %v541 = vsub.f32 1.5, %v540
          %v542 = vmul.f32 %v537, %v541
          %vm543 = vweird.f32 %v526
          %vm544 = vweird.f32 %v537
          %vm545 = vmor %vm543, %vm544
          %v546 = vsel %vm545, %v537, %v542
          %v547 = vld [vmem:[#allocation6] sm:$0x1]
          %v548 = vmul.f32 %v512, %v458
          %v549 = vsub.f32 %v547, %v548
          %v550 = vmul.f32 %v549, %v536
          %v551 = vmul.f32 %v550, %v546
          %v552 = vsel %vm237, %v551, 0.0
          %553 = vadd.xlane.f32.xlu0 %v552
          %v554 = vpop.xlane.xlu0 %553
          %v555 = vrot.slane %v554, 4
          %v556 = vadd.f32 %v554, %v555
          %v557 = vrot.slane %v556, 2
          %v558 = vadd.f32 %v556, %v557
          %v559 = vrot.slane %v558, 1
          %v560 = vadd.f32 %v558, %v559
          %s561 = vtos %v560
          %s562 = smul.f32 %s561, -0.015625
          %v563 = vstv %s562
          %vm564 = vcmask 0
          %565 = vst.msk [vmem:[#allocation7] sm:$0x1] %vm564, %v563
          %566 = vxpose.xlu0.b32.start [1/16] %v456, 128
          %567 = vxpose.xlu0.b32.cont [2/16] 0.0, 128
          %568 = vxpose.xlu0.b32.cont [3/16] 0.0, 128
          %569 = vxpose.xlu0.b32.cont [4/16] 0.0, 128
          %570 = vxpose.xlu0.b32.cont [5/16] 0.0, 128
          %571 = vxpose.xlu0.b32.cont [6/16] 0.0, 128
          %572 = vxpose.xlu0.b32.cont [7/16] 0.0, 128
          %573 = vxpose.xlu0.b32.cont [8/16] 0.0, 128
          %574 = vxpose.xlu0.b32.cont [9/16] 0.0, 128
          %575 = vxpose.xlu0.b32.cont [10/16] 0.0, 128
          %576 = vxpose.xlu0.b32.cont [11/16] 0.0, 128
          %577 = vxpose.xlu0.b32.cont [12/16] 0.0, 128
          %578 = vxpose.xlu0.b32.cont [13/16] 0.0, 128
          %579 = vxpose.xlu0.b32.cont [14/16] 0.0, 128
          %580 = vxpose.xlu0.b32.cont [15/16] 0.0, 128
          %581 = vxpose.xlu0.b32.end [16/16] 0.0, 128
          %v582 = vpop.trf.xlu0
          %v583 = vpop.trf.xlu0
          %v584 = vpop.trf.xlu0
          %v585 = vpop.trf.xlu0
          %v586 = vpop.trf.xlu0
          %v587 = vpop.trf.xlu0
          %v588 = vpop.trf.xlu0
          %v589 = vpop.trf.xlu0
          %v590 = vpop.trf.xlu0
          %v591 = vpop.trf.xlu0
          %v592 = vpop.trf.xlu0
          %v593 = vpop.trf.xlu0
          %v594 = vpop.trf.xlu0
          %v595 = vpop.trf.xlu0
          %v596 = vpop.trf.xlu0
          %v597 = vpop.trf.xlu0
          %vm598 = vcmask 7168
          %v600 = vsel %vm598, %v582, 0
          %v603 = vsel %vm598, %v583, 0
          %v606 = vsel %vm598, %v584, 0
          %v609 = vsel %vm598, %v585, 0
          %vm611 = vcmask 1040384
          %v613 = vsel %vm611, %v456, 0
          %615 = vmatpush.msra.mxu0 0.0
          %616 = vmatpush.msra.mxu0 0.0
          %617 = vmatpush.msra.mxu0 0.0
          %618 = vmatpush.msra.mxu0 0.0
          %619 = vmatpush.msra.mxu0 0.0
          %620 = vmatpush.msra.mxu0 0.0
          %621 = vmatpush.msra.mxu0 0.0
          %622 = vmatpush.msra.mxu0 0.0
          %623 = vmatpush.msra.mxu0 0.0
          %624 = vmatpush.msra.mxu0 0.0
          %625 = vmatpush.msra.mxu0 0.0
          %626 = vmatpush.msra.mxu0 0.0
          %627 = vmatpush.msra.mxu0 0.0
          %628 = vmatpush.msra.mxu0 0.0
          %629 = vmatpush.msra.mxu0 0.0
          %630 = vmatpush.msra.mxu0 %v613
          %631 = vmatmul.f32.gmra.mxu0 %v600
          %v632 = vpop.f32.mrf.mxu0
          %v633 = vadd.f32 0.0, %v632
          %634 = vmatmul.f32.gmra.mxu0 %v603
          %v635 = vpop.f32.mrf.mxu0
          %v636 = vadd.f32 0.0, %v635
          %637 = vmatmul.f32.gmra.mxu0 %v606
          %v638 = vpop.f32.mrf.mxu0
          %v639 = vadd.f32 0.0, %v638
          %640 = vmatmul.f32.gmra.mxu0 %v609
          %v641 = vpop.f32.mrf.mxu0
          %v642 = vadd.f32 0.0, %v641
          %643 = vdwg.mxu0
          %v644 = vmul.f32 %v633, 64.0
          %v645 = vmul.f32 %v636, 64.0
          %v646 = vmul.f32 %v639, 64.0
          %v647 = vmul.f32 %v642, 64.0
          %v648 = vsub.f32 %v440, %v644
          %v649 = vsub.f32 %v441, %v645
          %v650 = vsub.f32 %v442, %v646
          %v651 = vsub.f32 %v443, %v647
          %652 = vxpose.xlu0.b32.start [1/16] %v536, 128
          %653 = vxpose.xlu0.b32.cont [2/16] 0.0, 128
          %654 = vxpose.xlu0.b32.cont [3/16] 0.0, 128
          %655 = vxpose.xlu0.b32.cont [4/16] 0.0, 128
          %656 = vxpose.xlu0.b32.cont [5/16] 0.0, 128
          %657 = vxpose.xlu0.b32.cont [6/16] 0.0, 128
          %658 = vxpose.xlu0.b32.cont [7/16] 0.0, 128
          %659 = vxpose.xlu0.b32.cont [8/16] 0.0, 128
          %660 = vxpose.xlu0.b32.cont [9/16] 0.0, 128
          %661 = vxpose.xlu0.b32.cont [10/16] 0.0, 128
          %662 = vxpose.xlu0.b32.cont [11/16] 0.0, 128
          %663 = vxpose.xlu0.b32.cont [12/16] 0.0, 128
          %664 = vxpose.xlu0.b32.cont [13/16] 0.0, 128
          %665 = vxpose.xlu0.b32.cont [14/16] 0.0, 128
          %666 = vxpose.xlu0.b32.cont [15/16] 0.0, 128
          %667 = vxpose.xlu0.b32.end [16/16] 0.0, 128
          %v668 = vpop.trf.xlu0
          %v669 = vpop.trf.xlu0
          %v670 = vpop.trf.xlu0
          %v671 = vpop.trf.xlu0
          %v672 = vpop.trf.xlu0
          %v673 = vpop.trf.xlu0
          %v674 = vpop.trf.xlu0
          %v675 = vpop.trf.xlu0
          %v676 = vpop.trf.xlu0
          %v677 = vpop.trf.xlu0
          %v678 = vpop.trf.xlu0
          %v679 = vpop.trf.xlu0
          %v680 = vpop.trf.xlu0
          %v681 = vpop.trf.xlu0
          %v682 = vpop.trf.xlu0
          %v683 = vpop.trf.xlu0
          %v685 = vsel %vm598, %v668, 0
          %v688 = vsel %vm598, %v669, 0
          %v691 = vsel %vm598, %v670, 0
          %v694 = vsel %vm598, %v671, 0
          %v697 = vsel %vm611, %v536, 0
          %699 = vmatpush.msra.mxu0 0.0
          %700 = vmatpush.msra.mxu0 0.0
          %701 = vmatpush.msra.mxu0 0.0
          %702 = vmatpush.msra.mxu0 0.0
          %703 = vmatpush.msra.mxu0 0.0
          %704 = vmatpush.msra.mxu0 0.0
          %705 = vmatpush.msra.mxu0 0.0
          %706 = vmatpush.msra.mxu0 0.0
          %707 = vmatpush.msra.mxu0 0.0
          %708 = vmatpush.msra.mxu0 0.0
          %709 = vmatpush.msra.mxu0 0.0
          %710 = vmatpush.msra.mxu0 0.0
          %711 = vmatpush.msra.mxu0 0.0
          %712 = vmatpush.msra.mxu0 0.0
          %713 = vmatpush.msra.mxu0 0.0
          %714 = vmatpush.msra.mxu0 %v697
          %715 = vmatmul.f32.gmra.mxu0 %v685
          %v716 = vpop.f32.mrf.mxu0
          %v717 = vadd.f32 0.0, %v716
          %718 = vmatmul.f32.gmra.mxu0 %v688
          %v719 = vpop.f32.mrf.mxu0
          %v720 = vadd.f32 0.0, %v719
          %721 = vmatmul.f32.gmra.mxu0 %v691
          %v722 = vpop.f32.mrf.mxu0
          %v723 = vadd.f32 0.0, %v722
          %724 = vmatmul.f32.gmra.mxu0 %v694
          %v725 = vpop.f32.mrf.mxu0
          %v726 = vadd.f32 0.0, %v725
          %727 = vdwg.mxu0
          %v728 = vmul.f32 %v648, %v717
          %v729 = vmul.f32 %v649, %v720
          %v730 = vmul.f32 %v650, %v723
          %v731 = vmul.f32 %v651, %v726
          %v732 = vmul.f32 %v728, 0.015625
          %v733 = vmul.f32 %v729, 0.015625
          %v734 = vmul.f32 %v730, 0.015625
          %v735 = vmul.f32 %v731, 0.015625
          %736 = vxpose.xlu0.b32.start [1/16] %v458, 128
          %737 = vxpose.xlu0.b32.cont [2/16] 0.0, 128
          %738 = vxpose.xlu0.b32.cont [3/16] 0.0, 128
          %739 = vxpose.xlu0.b32.cont [4/16] 0.0, 128
          %740 = vxpose.xlu0.b32.cont [5/16] 0.0, 128
          %741 = vxpose.xlu0.b32.cont [6/16] 0.0, 128
          %742 = vxpose.xlu0.b32.cont [7/16] 0.0, 128
          %743 = vxpose.xlu0.b32.cont [8/16] 0.0, 128
          %744 = vxpose.xlu0.b32.cont [9/16] 0.0, 128
          %745 = vxpose.xlu0.b32.cont [10/16] 0.0, 128
          %746 = vxpose.xlu0.b32.cont [11/16] 0.0, 128
          %747 = vxpose.xlu0.b32.cont [12/16] 0.0, 128
          %748 = vxpose.xlu0.b32.cont [13/16] 0.0, 128
          %749 = vxpose.xlu0.b32.cont [14/16] 0.0, 128
          %750 = vxpose.xlu0.b32.cont [15/16] 0.0, 128
          %751 = vxpose.xlu0.b32.end [16/16] 0.0, 128
          %v752 = vpop.trf.xlu0
          %v753 = vpop.trf.xlu0
          %v754 = vpop.trf.xlu0
          %v755 = vpop.trf.xlu0
          %v756 = vpop.trf.xlu0
          %v757 = vpop.trf.xlu0
          %v758 = vpop.trf.xlu0
          %v759 = vpop.trf.xlu0
          %v760 = vpop.trf.xlu0
          %v761 = vpop.trf.xlu0
          %v762 = vpop.trf.xlu0
          %v763 = vpop.trf.xlu0
          %v764 = vpop.trf.xlu0
          %v765 = vpop.trf.xlu0
          %v766 = vpop.trf.xlu0
          %v767 = vpop.trf.xlu0
          %v769 = vsel %vm598, %v752, 0
          %v772 = vsel %vm598, %v753, 0
          %v775 = vsel %vm598, %v754, 0
          %v778 = vsel %vm598, %v755, 0
          %v781 = vsel %vm611, %v458, 0
          %783 = vmatpush.msra.mxu0 0.0
          %784 = vmatpush.msra.mxu0 0.0
          %785 = vmatpush.msra.mxu0 0.0
          %786 = vmatpush.msra.mxu0 0.0
          %787 = vmatpush.msra.mxu0 0.0
          %788 = vmatpush.msra.mxu0 0.0
          %789 = vmatpush.msra.mxu0 0.0
          %790 = vmatpush.msra.mxu0 0.0
          %791 = vmatpush.msra.mxu0 0.0
          %792 = vmatpush.msra.mxu0 0.0
          %793 = vmatpush.msra.mxu0 0.0
          %794 = vmatpush.msra.mxu0 0.0
          %795 = vmatpush.msra.mxu0 0.0
          %796 = vmatpush.msra.mxu0 0.0
          %797 = vmatpush.msra.mxu0 0.0
          %798 = vmatpush.msra.mxu0 %v781
          %799 = vmatmul.f32.gmra.mxu0 %v769
          %v800 = vpop.f32.mrf.mxu0
          %v801 = vadd.f32 0.0, %v800
          %802 = vmatmul.f32.gmra.mxu0 %v772
          %v803 = vpop.f32.mrf.mxu0
          %v804 = vadd.f32 0.0, %v803
          %805 = vmatmul.f32.gmra.mxu0 %v775
          %v806 = vpop.f32.mrf.mxu0
          %v807 = vadd.f32 0.0, %v806
          %808 = vmatmul.f32.gmra.mxu0 %v778
          %v809 = vpop.f32.mrf.mxu0
          %v810 = vadd.f32 0.0, %v809
          %811 = vdwg.mxu0
          %v812 = vmul.f32 %v801, 64.0
          %v813 = vmul.f32 %v804, 64.0
          %v814 = vmul.f32 %v807, 64.0
          %v815 = vmul.f32 %v810, 64.0
          %v816 = vsub.f32 %v444, %v812
          %v817 = vsub.f32 %v445, %v813
          %v818 = vsub.f32 %v446, %v814
          %v819 = vsub.f32 %v447, %v815
          %820 = vxpose.xlu0.b32.start [1/16] %v546, 128
          %821 = vxpose.xlu0.b32.cont [2/16] 0.0, 128
          %822 = vxpose.xlu0.b32.cont [3/16] 0.0, 128
          %823 = vxpose.xlu0.b32.cont [4/16] 0.0, 128
          %824 = vxpose.xlu0.b32.cont [5/16] 0.0, 128
          %825 = vxpose.xlu0.b32.cont [6/16] 0.0, 128
          %826 = vxpose.xlu0.b32.cont [7/16] 0.0, 128
          %827 = vxpose.xlu0.b32.cont [8/16] 0.0, 128
          %828 = vxpose.xlu0.b32.cont [9/16] 0.0, 128
          %829 = vxpose.xlu0.b32.cont [10/16] 0.0, 128
          %830 = vxpose.xlu0.b32.cont [11/16] 0.0, 128
          %831 = vxpose.xlu0.b32.cont [12/16] 0.0, 128
          %832 = vxpose.xlu0.b32.cont [13/16] 0.0, 128
          %833 = vxpose.xlu0.b32.cont [14/16] 0.0, 128
          %834 = vxpose.xlu0.b32.cont [15/16] 0.0, 128
          %835 = vxpose.xlu0.b32.end [16/16] 0.0, 128
          %v836 = vpop.trf.xlu0
          %v837 = vpop.trf.xlu0
          %v838 = vpop.trf.xlu0
          %v839 = vpop.trf.xlu0
          %v840 = vpop.trf.xlu0
          %v841 = vpop.trf.xlu0
          %v842 = vpop.trf.xlu0
          %v843 = vpop.trf.xlu0
          %v844 = vpop.trf.xlu0
          %v845 = vpop.trf.xlu0
          %v846 = vpop.trf.xlu0
          %v847 = vpop.trf.xlu0
          %v848 = vpop.trf.xlu0
          %v849 = vpop.trf.xlu0
          %v850 = vpop.trf.xlu0
          %v851 = vpop.trf.xlu0
          %v853 = vsel %vm598, %v836, 0
          %v856 = vsel %vm598, %v837, 0
          %v859 = vsel %vm598, %v838, 0
          %v862 = vsel %vm598, %v839, 0
          %v865 = vsel %vm611, %v546, 0
          %867 = vmatpush.msra.mxu0 0.0
          %868 = vmatpush.msra.mxu0 0.0
          %869 = vmatpush.msra.mxu0 0.0
          %870 = vmatpush.msra.mxu0 0.0
          %871 = vmatpush.msra.mxu0 0.0
          %872 = vmatpush.msra.mxu0 0.0
          %873 = vmatpush.msra.mxu0 0.0
          %874 = vmatpush.msra.mxu0 0.0
          %875 = vmatpush.msra.mxu0 0.0
          %876 = vmatpush.msra.mxu0 0.0
          %877 = vmatpush.msra.mxu0 0.0
          %878 = vmatpush.msra.mxu0 0.0
          %879 = vmatpush.msra.mxu0 0.0
          %880 = vmatpush.msra.mxu0 0.0
          %881 = vmatpush.msra.mxu0 0.0
          %882 = vmatpush.msra.mxu0 %v865
          %883 = vmatmul.f32.gmra.mxu0 %v853
          %v884 = vpop.f32.mrf.mxu0
          %v885 = vadd.f32 0.0, %v884
          %886 = vmatmul.f32.gmra.mxu0 %v856
          %v887 = vpop.f32.mrf.mxu0
          %v888 = vadd.f32 0.0, %v887
          %889 = vmatmul.f32.gmra.mxu0 %v859
          %v890 = vpop.f32.mrf.mxu0
          %v891 = vadd.f32 0.0, %v890
          %892 = vmatmul.f32.gmra.mxu0 %v862
          %v893 = vpop.f32.mrf.mxu0
          %v894 = vadd.f32 0.0, %v893
          %895 = vdwg.mxu0
          %v896 = vmul.f32 %v816, %v885
          %v897 = vmul.f32 %v817, %v888
          %v898 = vmul.f32 %v818, %v891
          %v899 = vmul.f32 %v819, %v894
          %v900 = vmul.f32 %v896, 0.015625
          %v901 = vmul.f32 %v897, 0.015625
          %v902 = vmul.f32 %v898, 0.015625
          %v903 = vmul.f32 %v899, 0.015625
          %v904 = vsub.f32 %v474, %v732
          %v905 = vsub.f32 %v475, %v733
          %v906 = vsub.f32 %v476, %v734
          %v907 = vsub.f32 %v477, %v735
          %v908 = vmul.f32 %v904, %v904
          %v909 = vmul.f32 %v905, %v905
          %v910 = vmul.f32 %v906, %v906
          %v911 = vmul.f32 %v907, %v907
          %v912 = vsel %vm226, %v908, 0.0
          %v913 = vsel %vm226, %v909, 0.0
          %v914 = vadd.f32 %v912, %v913
          %v915 = vsel %vm226, %v910, 0.0
          %v916 = vadd.f32 %v914, %v915
          %v917 = vsel %vm226, %v911, 0.0
          %v918 = vadd.f32 %v916, %v917
          %919 = vadd.xlane.f32.xlu0 %v918
          %v920 = vpop.xlane.xlu0 %919
          %v921 = vrot.slane %v920, 4
          %v922 = vadd.f32 %v920, %v921
          %v923 = vrot.slane %v922, 2
          %v924 = vadd.f32 %v922, %v923
          %v925 = vrot.slane %v924, 1
          %v926 = vadd.f32 %v924, %v925
          %s927 = vtos %v926
          %v928 = vstv %s927
          %929 = vst.msk [vmem:[#allocation9] sm:$0x1] %vm564, %v928
          %v930 = vsub.f32 %v474, %v900
          %v931 = vsub.f32 %v475, %v901
          %v932 = vsub.f32 %v476, %v902
          %v933 = vsub.f32 %v477, %v903
          %v934 = vmul.f32 %v930, %v930
          %v935 = vmul.f32 %v931, %v931
          %v936 = vmul.f32 %v932, %v932
          %v937 = vmul.f32 %v933, %v933
          %v938 = vsel %vm226, %v934, 0.0
          %v939 = vsel %vm226, %v935, 0.0
          %v940 = vadd.f32 %v938, %v939
          %v941 = vsel %vm226, %v936, 0.0
          %v942 = vadd.f32 %v940, %v941
          %v943 = vsel %vm226, %v937, 0.0
          %v944 = vadd.f32 %v942, %v943
          %945 = vadd.xlane.f32.xlu0 %v944
          %v946 = vpop.xlane.xlu0 %945
          %v947 = vrot.slane %v946, 4
          %v948 = vadd.f32 %v946, %v947
          %v949 = vrot.slane %v948, 2
          %v950 = vadd.f32 %v948, %v949
          %v951 = vrot.slane %v950, 1
          %v952 = vadd.f32 %v950, %v951
          %s953 = vtos %v952
          %v954 = vstv %s953
          %955 = vst.msk [vmem:[#allocation11] sm:$0x1] %vm564, %v954
        $region36: #{tpu_custom_call.1} parent=27 // pred_fallthru
          _
        // Predicated region
        $region37: #{tpu_custom_call.1} parent=27 // pred_check
          %p956 = pneg %p83
        $region38: #{tpu_custom_call.1} parent=27 // pred_check_branch
          %958 = sbr.rel (%p956) target = $region40
        $region39: #{tpu_custom_call.1} parent=27 // pred_region
          %960 = vsyncadd [#allocation8], 0
          %s962 = sshll.u32 [#allocation7], 4
          %s963 = int_to_ptr.vmem [resolvable:$true] %s962
          %s964 = sshll.u32 %s2, 4
          %s965 = int_to_ptr.hbm [resolvable:$true] %s964
          %967 = dma.vmem_to_hbm [thread:$0]  %s963, 16, %s965, [#allocation8]
        $region40: #{tpu_custom_call.1} parent=27 // pred_fallthru
          _
        // Predicated region
        $region41: #{tpu_custom_call.1} parent=27 // pred_check
          %p968 = pneg %p104
        $region42: #{tpu_custom_call.1} parent=27 // pred_check_branch
          %970 = sbr.rel (%p968) target = $region44
        $region43: #{tpu_custom_call.1} parent=27 // pred_region
          %972 = vsyncadd [#allocation10], 0
          %s974 = sshll.u32 [#allocation9], 4
          %s975 = int_to_ptr.vmem [resolvable:$true] %s974
          %s976 = sshll.u32 %s3, 4
          %s977 = int_to_ptr.hbm [resolvable:$true] %s976
          %979 = dma.vmem_to_hbm [thread:$0]  %s975, 16, %s977, [#allocation10]
        $region44: #{tpu_custom_call.1} parent=27 // pred_fallthru
          _
        // Predicated region
        $region45: #{tpu_custom_call.1} parent=27 // pred_check
          %p980 = pneg %p125
        $region46: #{tpu_custom_call.1} parent=27 // pred_check_branch
          %982 = sbr.rel (%p980) target = $region48
        $region47: #{tpu_custom_call.1} parent=27 // pred_region
          %984 = vsyncadd [#allocation10], 0
          %s986 = sshll.u32 [#allocation11], 4
          %s987 = int_to_ptr.vmem [resolvable:$true] %s986
          %s988 = sshll.u32 %s4, 4
          %s989 = int_to_ptr.hbm [resolvable:$true] %s988
          %991 = dma.vmem_to_hbm [thread:$0]  %s987, 16, %s989, [#allocation10]
        $region48: #{tpu_custom_call.1} parent=27 // pred_fallthru
          _
        // Predicated region
        $region49: #{tpu_custom_call.1} parent=27 // pred_check
          %p992 = pneg %p83
        $region50: #{tpu_custom_call.1} parent=27 // pred_check_branch
          %994 = sbr.rel (%p992) target = $region52
        $region51: #{tpu_custom_call.1} parent=27 // pred_region
          %996 = dma.done [#allocation8], 16
        $region52: #{tpu_custom_call.1} parent=27 // pred_fallthru
          _
        // Predicated region
        $region53: #{tpu_custom_call.1} parent=27 // pred_check
          %p997 = pneg %p104
        $region54: #{tpu_custom_call.1} parent=27 // pred_check_branch
          %999 = sbr.rel (%p997) target = $region56
        $region55: #{tpu_custom_call.1} parent=27 // pred_region
          %1001 = dma.done [#allocation10], 16
        $region56: #{tpu_custom_call.1} parent=27 // pred_fallthru
          _
        // Predicated region
        $region57: #{tpu_custom_call.1} parent=27 // pred_check
          %p1002 = pneg %p125
        $region58: #{tpu_custom_call.1} parent=27 // pred_check_branch
          %1004 = sbr.rel (%p1002) target = $region60
        $region59: #{tpu_custom_call.1} parent=27 // pred_region
          %1006 = dma.done [#allocation10], 16
        $region60: #{tpu_custom_call.1} parent=27 // pred_fallthru
          _
      $region28: #{tpu_custom_call.1} parent=5 // pred_fallthru
        _
      %p1007 = scmp.le.s32.totalorder 2, %s13
      // Predicated region
      $region61: #{tpu_custom_call.1} parent=5 // pred_check
        %p1008 = pneg %p1007
      $region62: #{tpu_custom_call.1} parent=5 // pred_check_branch
        %1010 = sbr.rel (%p1008) target = $region64
      $region63: #{tpu_custom_call.1} parent=5 // pred_region
        %s1011 = ssub.s32 %s13, 2
      $region64: #{tpu_custom_call.1} parent=5 // pred_fallthru
        _
    $region6: #{tpu_custom_call.1} parent=1 // loop_footer
      %s17 = sadd.s32 1, %s13
    $region7: #{tpu_custom_call.1} parent=1 // loop_footer_branch
      %12 = sbr.rel target = $region3
    $region8: #{tpu_custom_call.1} parent=1 // loop_exit
      _
    %1012 = vsyncpa [#allocation8], 1
    %s1013 = scalar_lea.sflag [#allocation8], 1
    %1014 = vsyncpa %s1013, 1
    %1015 = vsyncpa [#allocation10], 1

</llo_original>
